<compile_context>
chip_gen: v7x
topology: tpu7x:2x2x1
jax: 0.10.0
libtpu: 0.0.40
codegen_flags: <defaults>
</compile_context>

<pallas_src>
import numpy as np
import jax
import jax.numpy as jnp
from jax.experimental import pallas as pl
from jax.experimental.pallas import tpu as pltpu

FEATURE_DIM = 64
NUM_ACTIONS = 15

SLAB_WIDTH = 128          # lane-dense output slab width
TILE_B = 512              # batch rows per grid step (512 x 1024 x 4B = 2 MiB f32 x tile)

# Output slab column layout: [logits | value | logp | zero padding]
_LOGITS_LO, _LOGITS_HI = 0, NUM_ACTIONS                      # cols [0, 15)
_VALUE_COL = NUM_ACTIONS                                      # col 15
_LOGP_LO, _LOGP_HI = NUM_ACTIONS + 1, 2 * NUM_ACTIONS + 1     # cols [16, 31)


def _round_up(n, m):
    return (n + m - 1) // m * m


def _orthogonal(key, out_features, in_features, gain):
    """Deterministic orthogonal init matching torch.nn.init.orthogonal_ semantics."""
    rows, cols = out_features, in_features
    a = jax.random.normal(key, (rows, cols), dtype=jnp.float32)
    flat = a if rows >= cols else a.T
    q, r = jnp.linalg.qr(flat)
    d = jnp.diag(r)
    q = q * jnp.where(d >= 0, 1.0, -1.0)[None, :]
    if rows < cols:
        q = q.T
    return gain * q  # shape [out_features, in_features]


def policy_kernel(x_ref, we_ref, be_ref, wh_ref, bh_ref, out_ref):
    # Encoder: h = relu(x @ We + be).
    # x arrives as f32 (single HBM pass); cast to bf16 here (VPU, free) so the
    # MXU runs bf16 operands with f32 accumulation.
    xb = x_ref[...].astype(jnp.bfloat16)
    h = jnp.dot(xb, we_ref[...], preferred_element_type=jnp.float32)
    h = jnp.maximum(h + be_ref[...], 0.0)

    # Fused policy + value heads: one 128-wide lane-dense MXU pass (f32 operands).
    # W_heads layout: [wp | wv | wp (duplicate) | 0]; so
    #   head[:,  0:15] = logits, head[:, 15] = value, head[:, 16:31] = logits copy.
    head = jnp.dot(h, wh_ref[...], preferred_element_type=jnp.float32) + bh_ref[...]

    # In-kernel log-softmax over the logit lanes (max-subtraction trick).
    col = jax.lax.broadcasted_iota(jnp.int32, head.shape, dimension=1)
    is_logit = col < NUM_ACTIONS
    masked = jnp.where(is_logit, head, jnp.float32(-1e30))
    m = jnp.max(masked, axis=-1, keepdims=True)
    p = jnp.where(is_logit, jnp.exp(head - m), 0.0)
    logz = m + jnp.log(jnp.sum(p, axis=-1, keepdims=True))   # per-row log-sum-exp

    # Subtract the log-normalizer only in the duplicated logits band -> logp there.
    in_logp_band = jnp.logical_and(col >= _LOGP_LO, col < _LOGP_HI)
    out_ref[...] = jnp.where(in_logp_band, head - logz, head)


@jax.jit
def policy_forward(x_nchw, params):
    we, be, wp, bp, wv, bv = params
    B = x_nchw.shape[0]
    din = int(np.prod(x_nchw.shape[1:]))

    # Flatten NCHW -> [B, Din] (no-copy reshape). Keep f32: the bf16 cast happens
    # in-kernel so x is read from HBM exactly once.
    x = x_nchw.reshape(B, din)

    # f32 sublane multiple is 8. Only tiny / odd batches get a (cheap) pad; the
    # ragged last tile for large batches is handled by Pallas block masking.
    b8 = _round_up(B, 8)
    if b8 != B:
        x = jnp.pad(x, ((0, b8 - B), (0, 0)))

    tile_b = min(TILE_B, b8)
    grid = (pl.cdiv(b8, tile_b),)

    we_bf16 = we.astype(jnp.bfloat16)   # tiny (Din x 64), one-time convert

    # Fused head weights / bias laid out over the 128-wide output slab.
    w_heads = jnp.zeros((FEATURE_DIM, SLAB_WIDTH), jnp.float32)
    w_heads = w_heads.at[:, _LOGITS_LO:_LOGITS_HI].set(wp)
    w_heads = w_heads.at[:, _VALUE_COL:_VALUE_COL + 1].set(wv)
    w_heads = w_heads.at[:, _LOGP_LO:_LOGP_HI].set(wp)
    b_heads = jnp.zeros((1, SLAB_WIDTH), jnp.float32)
    b_heads = b_heads.at[:, _LOGITS_LO:_LOGITS_HI].set(bp)
    b_heads = b_heads.at[:, _VALUE_COL:_VALUE_COL + 1].set(bv)
    b_heads = b_heads.at[:, _LOGP_LO:_LOGP_HI].set(bp)

    slab = pl.pallas_call(
        policy_kernel,
        out_shape=jax.ShapeDtypeStruct((b8, SLAB_WIDTH), jnp.float32),
        grid=grid,
        in_specs=[
            pl.BlockSpec((tile_b, din), lambda i: (i, 0)),              # x tile (pipelined)
            pl.BlockSpec((din, FEATURE_DIM), lambda i: (0, 0)),         # We (resident, bf16)
            pl.BlockSpec((1, FEATURE_DIM), lambda i: (0, 0)),           # be
            pl.BlockSpec((FEATURE_DIM, SLAB_WIDTH), lambda i: (0, 0)),  # fused head W
            pl.BlockSpec((1, SLAB_WIDTH), lambda i: (0, 0)),            # fused head b
        ],
        out_specs=pl.BlockSpec((tile_b, SLAB_WIDTH), lambda i: (i, 0)),
        compiler_params=pltpu.CompilerParams(
            dimension_semantics=("parallel",),          # megacore sharding on v7x
            vmem_limit_bytes=32 * 1024 * 1024,          # usage ~6 MiB; safe on v5e/v6e/v7x
        ),
    )(x, we_bf16, be, w_heads, b_heads)

    slab = slab[:B]
    logits = slab[:, _LOGITS_LO:_LOGITS_HI]
    value = slab[:, _VALUE_COL]                  # value(h).squeeze(1)
    logp = slab[:, _LOGP_LO:_LOGP_HI]            # Categorical(logits).logits (normalized)
    return value, logp, logits


def make_params(key, in_features):
    k_enc, k_pol, k_val = jax.random.split(key, 3)
    # Encoder: flatten + Linear(Din, F); Kaiming-ish normal init, zero bias.
    # TODO(synk): the torch module takes an arbitrary injected `encoder`; a simple
    # flatten + Linear + ReLU stand-in is used here.
    we = (jax.random.normal(k_enc, (in_features, FEATURE_DIM), dtype=jnp.float32)
          * jnp.sqrt(2.0 / in_features))
    be = jnp.zeros((1, FEATURE_DIM), dtype=jnp.float32)
    # Policy head: orthogonal init, gain=0.01, zero bias. Stored as [F, A].
    wp = _orthogonal(k_pol, NUM_ACTIONS, FEATURE_DIM, gain=0.01).T
    bp = jnp.zeros((1, NUM_ACTIONS), dtype=jnp.float32)
    # Value head: orthogonal init, gain=1.0, zero bias. Stored as [F, 1].
    wv = _orthogonal(k_val, 1, FEATURE_DIM, gain=1.0).T
    bv = jnp.zeros((1, 1), dtype=jnp.float32)
    return we, be, wp, bp, wv, bv


def reference_forward(x_nchw, params):
    we, be, wp, bp, wv, bv = params
    B = x_nchw.shape[0]
    x = x_nchw.reshape(B, -1).astype(jnp.bfloat16)
    h = jnp.dot(x, we.astype(jnp.bfloat16), preferred_element_type=jnp.float32)
    h = jnp.maximum(h + be, 0.0)
    logits = h @ wp + bp
    logp = jax.nn.log_softmax(logits, axis=-1)
    value = (h @ wv + bv)[:, 0]
    return value, logp, logits


if __name__ == "__main__":
    key = jax.random.PRNGKey(0)
    k_x, k_p = jax.random.split(key)

    # Small NCHW input consistent with an image-observation policy.
    B, C, H, W = 2, 4, 16, 16
    x = jax.random.normal(k_x, (B, C, H, W), dtype=jnp.float32)

    params = make_params(k_p, C * H * W)

    value, logp, logits = policy_forward(x, params)
    jax.block_until_ready((value, logp, logits))

    # Sanity check against a pure-JAX reference (same bf16 encoder operands).
    v_ref, lp_ref, lg_ref = reference_forward(x, params)
    np.testing.assert_allclose(np.asarray(value), np.asarray(v_ref), rtol=1e-3, atol=1e-3)
    np.testing.assert_allclose(np.asarray(logits), np.asarray(lg_ref), rtol=1e-3, atol=1e-3)
    np.testing.assert_allclose(np.asarray(logp), np.asarray(lp_ref), rtol=1e-3, atol=1e-3)

    print("KERNEL_OK")
</pallas_src>

<mosaic_0001>
module attributes {stable_mosaic.version = 11 : i64} {
  func.func @policy_kernel(%arg0: i32, %arg1: memref<8x1024xf32, #tpu.memory_space<vmem>>, %arg2: memref<1024x64xbf16, #tpu.memory_space<vmem>>, %arg3: memref<1x64xf32, #tpu.memory_space<vmem>>, %arg4: memref<64x128xf32, #tpu.memory_space<vmem>>, %arg5: memref<1x128xf32, #tpu.memory_space<vmem>>, %arg6: memref<8x128xf32, #tpu.memory_space<vmem>>) attributes {dimension_semantics = [#tpu.dimension_semantics<parallel>], iteration_bounds = array<i64: 1>, scalar_prefetch = 0 : i64, scratch_operands = 0 : i64, tpu.core_type = #tpu.core_type<tc>, window_params = [{transform_indices = @transform_0, window_bounds = array<i64: 8, 1024>}, {pipeline_mode = #tpu.pipeline_mode<synchronous>, transform_indices = @transform_1, window_bounds = array<i64: 1024, 64>}, {pipeline_mode = #tpu.pipeline_mode<synchronous>, transform_indices = @transform_2, window_bounds = array<i64: 1, 64>}, {pipeline_mode = #tpu.pipeline_mode<synchronous>, transform_indices = @transform_3, window_bounds = array<i64: 64, 128>}, {pipeline_mode = #tpu.pipeline_mode<synchronous>, transform_indices = @transform_4, window_bounds = array<i64: 1, 128>}, {transform_indices = @transform_5, window_bounds = array<i64: 8, 128>}]} {
    %c0 = arith.constant 0 : index
    %c0_0 = arith.constant 0 : index
    %0 = vector.load %arg1[%c0, %c0_0] : memref<8x1024xf32, #tpu.memory_space<vmem>>, vector<8x1024xf32>
    %1 = arith.truncf %0 : vector<8x1024xf32> to vector<8x1024xbf16>
    %c0_1 = arith.constant 0 : index
    %c0_2 = arith.constant 0 : index
    %2 = vector.load %arg2[%c0_1, %c0_2] : memref<1024x64xbf16, #tpu.memory_space<vmem>>, vector<1024x64xbf16>
    %cst = arith.constant dense<0.000000e+00> : vector<8x64xf32>
    %3 = tpu.matmul %1, %2, %cst {dimension_numbers = #tpu.dot_dimension_numbers<[1], [0], [0], [1], [0, 0, 1, 1], [], []>} : vector<8x1024xbf16>, vector<1024x64xbf16>, vector<8x64xf32> -> vector<8x64xf32>
    %c0_3 = arith.constant 0 : index
    %c0_4 = arith.constant 0 : index
    %4 = vector.load %arg3[%c0_3, %c0_4] : memref<1x64xf32, #tpu.memory_space<vmem>>, vector<1x64xf32>
    %5 = vector.broadcast %4 : vector<1x64xf32> to vector<8x64xf32>
    %6 = arith.addf %3, %5 : vector<8x64xf32>
    %cst_5 = arith.constant 0.000000e+00 : f32
    %7 = vector.broadcast %cst_5 : f32 to vector<8x64xf32>
    %8 = arith.maximumf %6, %7 : vector<8x64xf32>
    %c0_6 = arith.constant 0 : index
    %c0_7 = arith.constant 0 : index
    %9 = vector.load %arg4[%c0_6, %c0_7] : memref<64x128xf32, #tpu.memory_space<vmem>>, vector<64x128xf32>
    %cst_8 = arith.constant dense<0.000000e+00> : vector<8x128xf32>
    %10 = tpu.matmul %8, %9, %cst_8 {dimension_numbers = #tpu.dot_dimension_numbers<[1], [0], [0], [1], [0, 0, 1, 1], [], []>} : vector<8x64xf32>, vector<64x128xf32>, vector<8x128xf32> -> vector<8x128xf32>
    %c0_9 = arith.constant 0 : index
    %c0_10 = arith.constant 0 : index
    %11 = vector.load %arg5[%c0_9, %c0_10] : memref<1x128xf32, #tpu.memory_space<vmem>>, vector<1x128xf32>
    %12 = vector.broadcast %11 : vector<1x128xf32> to vector<8x128xf32>
    %13 = arith.addf %10, %12 : vector<8x128xf32>
    %14 = tpu.iota {dimensions = array<i32: 1>} : vector<8x128xi32>
    %c15_i32 = arith.constant 15 : i32
    %15 = vector.broadcast %c15_i32 : i32 to vector<8x128xi32>
    %16 = arith.cmpi slt, %14, %15 : vector<8x128xi32>
    %cst_11 = arith.constant -1.000000e+30 : f32
    %17 = vector.broadcast %cst_11 : f32 to vector<8x128xf32>
    %18 = arith.select %16, %13, %17 : vector<8x128xi1>, vector<8x128xf32>
    %cst_12 = arith.constant dense<0xFF800000> : vector<8xf32>
    %19 = vector.multi_reduction <maximumf>, %18, %cst_12 [1] : vector<8x128xf32> to vector<8xf32>
    %20 = vector.shape_cast %19 : vector<8xf32> to vector<8x1xf32>
    %21 = vector.broadcast %20 : vector<8x1xf32> to vector<8x128xf32>
    %22 = arith.subf %13, %21 : vector<8x128xf32>
    %23 = math.exp %22 : vector<8x128xf32>
    %cst_13 = arith.constant 0.000000e+00 : f32
    %24 = vector.broadcast %cst_13 : f32 to vector<8x128xf32>
    %25 = arith.select %16, %23, %24 : vector<8x128xi1>, vector<8x128xf32>
    %cst_14 = arith.constant dense<0.000000e+00> : vector<8xf32>
    %26 = vector.multi_reduction <add>, %25, %cst_14 [1] : vector<8x128xf32> to vector<8xf32>
    %27 = vector.shape_cast %26 : vector<8xf32> to vector<8x1xf32>
    %28 = math.log %27 : vector<8x1xf32>
    %29 = arith.addf %20, %28 : vector<8x1xf32>
    %c16_i32 = arith.constant 16 : i32
    %30 = vector.broadcast %c16_i32 : i32 to vector<8x128xi32>
    %31 = arith.cmpi sge, %14, %30 : vector<8x128xi32>
    %c31_i32 = arith.constant 31 : i32
    %32 = vector.broadcast %c31_i32 : i32 to vector<8x128xi32>
    %33 = arith.cmpi slt, %14, %32 : vector<8x128xi32>
    %34 = arith.andi %31, %33 : vector<8x128xi1>
    %35 = vector.broadcast %29 : vector<8x1xf32> to vector<8x128xf32>
    %36 = arith.subf %13, %35 : vector<8x128xf32>
    %37 = arith.select %34, %36, %13 : vector<8x128xi1>, vector<8x128xf32>
    %c0_15 = arith.constant 0 : index
    %c0_16 = arith.constant 0 : index
    %38 = vector.load %arg6[%c0_15, %c0_16] : memref<8x128xf32, #tpu.memory_space<vmem>>, vector<8x128xf32>
    tpu.vector_store %arg6[%c0_15, %c0_16], %37 {strides = array<i32>} : memref<8x128xf32, #tpu.memory_space<vmem>>, vector<8x128xf32>,
    return
  }
  func.func @transform_0(%arg0: i32) -> (i32, i32) {
    %c0_i32 = arith.constant 0 : i32
    %c0_i32_0 = arith.constant 0 : i32
    return %arg0, %c0_i32 : i32, i32
  }
  func.func @transform_1(%arg0: i32) -> (i32, i32) {
    %c0_i32 = arith.constant 0 : i32
    %c0_i32_0 = arith.constant 0 : i32
    %c0_i32_1 = arith.constant 0 : i32
    return %c0_i32, %c0_i32_0 : i32, i32
  }
  func.func @transform_2(%arg0: i32) -> (i32, i32) {
    %c0_i32 = arith.constant 0 : i32
    %c0_i32_0 = arith.constant 0 : i32
    %c0_i32_1 = arith.constant 0 : i32
    return %c0_i32, %c0_i32_0 : i32, i32
  }
  func.func @transform_3(%arg0: i32) -> (i32, i32) {
    %c0_i32 = arith.constant 0 : i32
    %c0_i32_0 = arith.constant 0 : i32
    %c0_i32_1 = arith.constant 0 : i32
    return %c0_i32, %c0_i32_0 : i32, i32
  }
  func.func @transform_4(%arg0: i32) -> (i32, i32) {
    %c0_i32 = arith.constant 0 : i32
    %c0_i32_0 = arith.constant 0 : i32
    %c0_i32_1 = arith.constant 0 : i32
    return %c0_i32, %c0_i32_0 : i32, i32
  }
  func.func @transform_5(%arg0: i32) -> (i32, i32) {
    %c0_i32 = arith.constant 0 : i32
    %c0_i32_0 = arith.constant 0 : i32
    return %arg0, %c0_i32 : i32, i32
  }
}

</mosaic_0001>

<llo_original>
// kernel: policy_forward.1
$region0: #{policy_forward.1}
  #allocation0 [shape = 'u32[]', space=smem, size = 0x4, offset = 0x4, fixed_abs, tag = 'smem constant byte address 0x4 - core index']
  #allocation1 [shape = 'u32[144,128]{1,0:T(1,128)}', space=vmem, size = 0x12000, scoped, tag = 'internal scratch']
  %s0 = inlined_call_operand.vmem [shape: f32[8,1024], index: 0, kind: input, shape index: {}]
  %s1 = inlined_call_operand.vmem [shape: bf16[1024,64], index: 1, kind: input, shape index: {}]
  %s2 = inlined_call_operand.vmem [shape: f32[1,64], index: 2, kind: input, shape index: {}]
  %s3 = inlined_call_operand.vmem [shape: f32[64,128], index: 3, kind: input, shape index: {}]
  %s4 = inlined_call_operand.vmem [shape: f32[1,128], index: 4, kind: input, shape index: {}]
  %s5 = inlined_call_operand.vmem [shape: f32[8,128], index: 5, kind: output, shape index: {}]
  %s6 = sld [smem:[#allocation0]]
  $region30: #{policy_forward.1} parent=0
    _
  %s8 = ssub.s32 1, %s6
  %s9 = scalar_select 0, %s8, %s6
  // Predicated region
  $region2: #{policy_forward.1} parent=0 // pred_check
    _
  $region3: #{policy_forward.1} parent=0 // pred_check_branch
    %11 = sbr.rel (0) target = $region5
  $region4: #{policy_forward.1} parent=0 // pred_region
    _
  $region5: #{policy_forward.1} parent=0 // pred_fallthru
    _
  // Predicated region
  $region6: #{policy_forward.1} parent=0 // pred_check
    _
  $region7: #{policy_forward.1} parent=0 // pred_check_branch
    %13 = sbr.rel (0) target = $region9
  $region8: #{policy_forward.1} parent=0 // pred_region
    _
  $region9: #{policy_forward.1} parent=0 // pred_fallthru
    _
  // Predicated region
  $region10: #{policy_forward.1} parent=0 // pred_check
    _
  $region11: #{policy_forward.1} parent=0 // pred_check_branch
    %15 = sbr.rel (0) target = $region13
  $region12: #{policy_forward.1} parent=0 // pred_region
    _
  $region13: #{policy_forward.1} parent=0 // pred_fallthru
    _
  // Predicated region
  $region14: #{policy_forward.1} parent=0 // pred_check
    _
  $region15: #{policy_forward.1} parent=0 // pred_check_branch
    %17 = sbr.rel (0) target = $region17
  $region16: #{policy_forward.1} parent=0 // pred_region
    _
  $region17: #{policy_forward.1} parent=0 // pred_fallthru
    _
  // Predicated region
  $region18: #{policy_forward.1} parent=0 // pred_check
    _
  $region19: #{policy_forward.1} parent=0 // pred_check_branch
    %19 = sbr.rel (0) target = $region21
  $region20: #{policy_forward.1} parent=0 // pred_region
    _
  $region21: #{policy_forward.1} parent=0 // pred_fallthru
    _
  %v21 = vld [vmem:[%s0] sm:$0xff]
  %v22 = vld [vmem:[%s0 + $0x8] sm:$0xff]
  %v23 = vld [vmem:[%s0 + $0x10] sm:$0xff]
  %v24 = vld [vmem:[%s0 + $0x18] sm:$0xff]
  %v25 = vld [vmem:[%s0 + $0x20] sm:$0xff]
  %v26 = vld [vmem:[%s0 + $0x28] sm:$0xff]
  %v27 = vld [vmem:[%s0 + $0x30] sm:$0xff]
  %v28 = vld [vmem:[%s0 + $0x38] sm:$0xff]
  %v29 = vpack.c.bf16 %v21, %v21
  %v30 = vpack.c.bf16 %v22, %v22
  %v31 = vpack.c.bf16 %v23, %v23
  %v32 = vpack.c.bf16 %v24, %v24
  %v33 = vpack.c.bf16 %v25, %v25
  %v34 = vpack.c.bf16 %v26, %v26
  %v35 = vpack.c.bf16 %v27, %v27
  %v36 = vpack.c.bf16 %v28, %v28
  %v37 = vld [vmem:[%s1] sm:$0xf]
  %v38 = vld [vmem:[%s1 + $0x4] sm:$0xf]
  %v39 = vld [vmem:[%s1 + $0x8] sm:$0xf]
  %v40 = vld [vmem:[%s1 + $0xc] sm:$0xf]
  %v41 = vld [vmem:[%s1 + $0x10] sm:$0xf]
  %v42 = vld [vmem:[%s1 + $0x14] sm:$0xf]
  %v43 = vld [vmem:[%s1 + $0x18] sm:$0xf]
  %v44 = vld [vmem:[%s1 + $0x1c] sm:$0xf]
  %v45 = vld [vmem:[%s1 + $0x20] sm:$0xf]
  %v46 = vld [vmem:[%s1 + $0x24] sm:$0xf]
  %v47 = vld [vmem:[%s1 + $0x28] sm:$0xf]
  %v48 = vld [vmem:[%s1 + $0x2c] sm:$0xf]
  %v49 = vld [vmem:[%s1 + $0x30] sm:$0xf]
  %v50 = vld [vmem:[%s1 + $0x34] sm:$0xf]
  %v51 = vld [vmem:[%s1 + $0x38] sm:$0xf]
  %v52 = vld [vmem:[%s1 + $0x3c] sm:$0xf]
  %v53 = vld [vmem:[%s1 + $0x40] sm:$0xf]
  %v54 = vld [vmem:[%s1 + $0x44] sm:$0xf]
  %v55 = vld [vmem:[%s1 + $0x48] sm:$0xf]
  %v56 = vld [vmem:[%s1 + $0x4c] sm:$0xf]
  %v57 = vld [vmem:[%s1 + $0x50] sm:$0xf]
  %v58 = vld [vmem:[%s1 + $0x54] sm:$0xf]
  %v59 = vld [vmem:[%s1 + $0x58] sm:$0xf]
  %v60 = vld [vmem:[%s1 + $0x5c] sm:$0xf]
  %v61 = vld [vmem:[%s1 + $0x60] sm:$0xf]
  %v62 = vld [vmem:[%s1 + $0x64] sm:$0xf]
  %v63 = vld [vmem:[%s1 + $0x68] sm:$0xf]
  %v64 = vld [vmem:[%s1 + $0x6c] sm:$0xf]
  %v65 = vld [vmem:[%s1 + $0x70] sm:$0xf]
  %v66 = vld [vmem:[%s1 + $0x74] sm:$0xf]
  %v67 = vld [vmem:[%s1 + $0x78] sm:$0xf]
  %v68 = vld [vmem:[%s1 + $0x7c] sm:$0xf]
  %v69 = vld [vmem:[%s1 + $0x80] sm:$0xf]
  %v70 = vld [vmem:[%s1 + $0x84] sm:$0xf]
  %v71 = vld [vmem:[%s1 + $0x88] sm:$0xf]
  %v72 = vld [vmem:[%s1 + $0x8c] sm:$0xf]
  %v73 = vld [vmem:[%s1 + $0x90] sm:$0xf]
  %v74 = vld [vmem:[%s1 + $0x94] sm:$0xf]
  %v75 = vld [vmem:[%s1 + $0x98] sm:$0xf]
  %v76 = vld [vmem:[%s1 + $0x9c] sm:$0xf]
  %v77 = vld [vmem:[%s1 + $0xa0] sm:$0xf]
  %v78 = vld [vmem:[%s1 + $0xa4] sm:$0xf]
  %v79 = vld [vmem:[%s1 + $0xa8] sm:$0xf]
  %v80 = vld [vmem:[%s1 + $0xac] sm:$0xf]
  %v81 = vld [vmem:[%s1 + $0xb0] sm:$0xf]
  %v82 = vld [vmem:[%s1 + $0xb4] sm:$0xf]
  %v83 = vld [vmem:[%s1 + $0xb8] sm:$0xf]
  %v84 = vld [vmem:[%s1 + $0xbc] sm:$0xf]
  %v85 = vld [vmem:[%s1 + $0xc0] sm:$0xf]
  %v86 = vld [vmem:[%s1 + $0xc4] sm:$0xf]
  %v87 = vld [vmem:[%s1 + $0xc8] sm:$0xf]
  %v88 = vld [vmem:[%s1 + $0xcc] sm:$0xf]
  %v89 = vld [vmem:[%s1 + $0xd0] sm:$0xf]
  %v90 = vld [vmem:[%s1 + $0xd4] sm:$0xf]
  %v91 = vld [vmem:[%s1 + $0xd8] sm:$0xf]
  %v92 = vld [vmem:[%s1 + $0xdc] sm:$0xf]
  %v93 = vld [vmem:[%s1 + $0xe0] sm:$0xf]
  %v94 = vld [vmem:[%s1 + $0xe4] sm:$0xf]
  %v95 = vld [vmem:[%s1 + $0xe8] sm:$0xf]
  %v96 = vld [vmem:[%s1 + $0xec] sm:$0xf]
  %v97 = vld [vmem:[%s1 + $0xf0] sm:$0xf]
  %v98 = vld [vmem:[%s1 + $0xf4] sm:$0xf]
  %v99 = vld [vmem:[%s1 + $0xf8] sm:$0xf]
  %v100 = vld [vmem:[%s1 + $0xfc] sm:$0xf]
  %v101 = vld [vmem:[%s1 + $0x100] sm:$0xf]
  %v102 = vld [vmem:[%s1 + $0x104] sm:$0xf]
  %v103 = vld [vmem:[%s1 + $0x108] sm:$0xf]
  %v104 = vld [vmem:[%s1 + $0x10c] sm:$0xf]
  %v105 = vld [vmem:[%s1 + $0x110] sm:$0xf]
  %v106 = vld [vmem:[%s1 + $0x114] sm:$0xf]
  %v107 = vld [vmem:[%s1 + $0x118] sm:$0xf]
  %v108 = vld [vmem:[%s1 + $0x11c] sm:$0xf]
  %v109 = vld [vmem:[%s1 + $0x120] sm:$0xf]
  %v110 = vld [vmem:[%s1 + $0x124] sm:$0xf]
  %v111 = vld [vmem:[%s1 + $0x128] sm:$0xf]
  %v112 = vld [vmem:[%s1 + $0x12c] sm:$0xf]
  %v113 = vld [vmem:[%s1 + $0x130] sm:$0xf]
  %v114 = vld [vmem:[%s1 + $0x134] sm:$0xf]
  %v115 = vld [vmem:[%s1 + $0x138] sm:$0xf]
  %v116 = vld [vmem:[%s1 + $0x13c] sm:$0xf]
  %v117 = vld [vmem:[%s1 + $0x140] sm:$0xf]
  %v118 = vld [vmem:[%s1 + $0x144] sm:$0xf]
  %v119 = vld [vmem:[%s1 + $0x148] sm:$0xf]
  %v120 = vld [vmem:[%s1 + $0x14c] sm:$0xf]
  %v121 = vld [vmem:[%s1 + $0x150] sm:$0xf]
  %v122 = vld [vmem:[%s1 + $0x154] sm:$0xf]
  %v123 = vld [vmem:[%s1 + $0x158] sm:$0xf]
  %v124 = vld [vmem:[%s1 + $0x15c] sm:$0xf]
  %v125 = vld [vmem:[%s1 + $0x160] sm:$0xf]
  %v126 = vld [vmem:[%s1 + $0x164] sm:$0xf]
  %v127 = vld [vmem:[%s1 + $0x168] sm:$0xf]
  %v128 = vld [vmem:[%s1 + $0x16c] sm:$0xf]
  %v129 = vld [vmem:[%s1 + $0x170] sm:$0xf]
  %v130 = vld [vmem:[%s1 + $0x174] sm:$0xf]
  %v131 = vld [vmem:[%s1 + $0x178] sm:$0xf]
  %v132 = vld [vmem:[%s1 + $0x17c] sm:$0xf]
  %v133 = vld [vmem:[%s1 + $0x180] sm:$0xf]
  %v134 = vld [vmem:[%s1 + $0x184] sm:$0xf]
  %v135 = vld [vmem:[%s1 + $0x188] sm:$0xf]
  %v136 = vld [vmem:[%s1 + $0x18c] sm:$0xf]
  %v137 = vld [vmem:[%s1 + $0x190] sm:$0xf]
  %v138 = vld [vmem:[%s1 + $0x194] sm:$0xf]
  %v139 = vld [vmem:[%s1 + $0x198] sm:$0xf]
  %v140 = vld [vmem:[%s1 + $0x19c] sm:$0xf]
  %v141 = vld [vmem:[%s1 + $0x1a0] sm:$0xf]
  %v142 = vld [vmem:[%s1 + $0x1a4] sm:$0xf]
  %v143 = vld [vmem:[%s1 + $0x1a8] sm:$0xf]
  %v144 = vld [vmem:[%s1 + $0x1ac] sm:$0xf]
  %v145 = vld [vmem:[%s1 + $0x1b0] sm:$0xf]
  %v146 = vld [vmem:[%s1 + $0x1b4] sm:$0xf]
  %v147 = vld [vmem:[%s1 + $0x1b8] sm:$0xf]
  %v148 = vld [vmem:[%s1 + $0x1bc] sm:$0xf]
  %v149 = vld [vmem:[%s1 + $0x1c0] sm:$0xf]
  %v150 = vld [vmem:[%s1 + $0x1c4] sm:$0xf]
  %v151 = vld [vmem:[%s1 + $0x1c8] sm:$0xf]
  %v152 = vld [vmem:[%s1 + $0x1cc] sm:$0xf]
  %v153 = vld [vmem:[%s1 + $0x1d0] sm:$0xf]
  %v154 = vld [vmem:[%s1 + $0x1d4] sm:$0xf]
  %v155 = vld [vmem:[%s1 + $0x1d8] sm:$0xf]
  %v156 = vld [vmem:[%s1 + $0x1dc] sm:$0xf]
  %v157 = vld [vmem:[%s1 + $0x1e0] sm:$0xf]
  %v158 = vld [vmem:[%s1 + $0x1e4] sm:$0xf]
  %v159 = vld [vmem:[%s1 + $0x1e8] sm:$0xf]
  %v160 = vld [vmem:[%s1 + $0x1ec] sm:$0xf]
  %v161 = vld [vmem:[%s1 + $0x1f0] sm:$0xf]
  %v162 = vld [vmem:[%s1 + $0x1f4] sm:$0xf]
  %v163 = vld [vmem:[%s1 + $0x1f8] sm:$0xf]
  %v164 = vld [vmem:[%s1 + $0x1fc] sm:$0xf]
  %v165 = vld [vmem:[%s2] sm:$0x1]
  %v167 = vlaneseq
  %v168 = vshrl.u32 %v167, 7
  %v169 = vsub.s32 0, %v168
  %v170 = vrot.slane %v165, %v169
  %v300 = vunpack.c.l.b16 %v37
  %v301 = vunpack.c.l.b16 %v38
  %v302 = vunpack.c.l.b16 %v39
  %v303 = vunpack.c.l.b16 %v40
  %v304 = vunpack.c.l.b16 %v41
  %v305 = vunpack.c.l.b16 %v42
  %v306 = vunpack.c.l.b16 %v43
  %v307 = vunpack.c.l.b16 %v44
  %v308 = vunpack.c.l.b16 %v45
  %v309 = vunpack.c.l.b16 %v46
  %v310 = vunpack.c.l.b16 %v47
  %v311 = vunpack.c.l.b16 %v48
  %v312 = vunpack.c.l.b16 %v49
  %v313 = vunpack.c.l.b16 %v50
  %v314 = vunpack.c.l.b16 %v51
  %v315 = vunpack.c.l.b16 %v52
  %v316 = vunpack.c.l.b16 %v53
  %v317 = vunpack.c.l.b16 %v54
  %v318 = vunpack.c.l.b16 %v55
  %v319 = vunpack.c.l.b16 %v56
  %v320 = vunpack.c.l.b16 %v57
  %v321 = vunpack.c.l.b16 %v58
  %v322 = vunpack.c.l.b16 %v59
  %v323 = vunpack.c.l.b16 %v60
  %v324 = vunpack.c.l.b16 %v61
  %v325 = vunpack.c.l.b16 %v62
  %v326 = vunpack.c.l.b16 %v63
  %v327 = vunpack.c.l.b16 %v64
  %v328 = vunpack.c.l.b16 %v65
  %v329 = vunpack.c.l.b16 %v66
  %v330 = vunpack.c.l.b16 %v67
  %v331 = vunpack.c.l.b16 %v68
  %v332 = vunpack.c.l.b16 %v69
  %v333 = vunpack.c.l.b16 %v70
  %v334 = vunpack.c.l.b16 %v71
  %v335 = vunpack.c.l.b16 %v72
  %v336 = vunpack.c.l.b16 %v73
  %v337 = vunpack.c.l.b16 %v74
  %v338 = vunpack.c.l.b16 %v75
  %v339 = vunpack.c.l.b16 %v76
  %v340 = vunpack.c.l.b16 %v77
  %v341 = vunpack.c.l.b16 %v78
  %v342 = vunpack.c.l.b16 %v79
  %v343 = vunpack.c.l.b16 %v80
  %v344 = vunpack.c.l.b16 %v81
  %v345 = vunpack.c.l.b16 %v82
  %v346 = vunpack.c.l.b16 %v83
  %v347 = vunpack.c.l.b16 %v84
  %v348 = vunpack.c.l.b16 %v85
  %v349 = vunpack.c.l.b16 %v86
  %v350 = vunpack.c.l.b16 %v87
  %v351 = vunpack.c.l.b16 %v88
  %v352 = vunpack.c.l.b16 %v89
  %v353 = vunpack.c.l.b16 %v90
  %v354 = vunpack.c.l.b16 %v91
  %v355 = vunpack.c.l.b16 %v92
  %v356 = vunpack.c.l.b16 %v93
  %v357 = vunpack.c.l.b16 %v94
  %v358 = vunpack.c.l.b16 %v95
  %v359 = vunpack.c.l.b16 %v96
  %v360 = vunpack.c.l.b16 %v97
  %v361 = vunpack.c.l.b16 %v98
  %v362 = vunpack.c.l.b16 %v99
  %v363 = vunpack.c.l.b16 %v100
  %v364 = vunpack.c.l.b16 %v101
  %v365 = vunpack.c.l.b16 %v102
  %v366 = vunpack.c.l.b16 %v103
  %v367 = vunpack.c.l.b16 %v104
  %v368 = vunpack.c.l.b16 %v105
  %v369 = vunpack.c.l.b16 %v106
  %v370 = vunpack.c.l.b16 %v107
  %v371 = vunpack.c.l.b16 %v108
  %v372 = vunpack.c.l.b16 %v109
  %v373 = vunpack.c.l.b16 %v110
  %v374 = vunpack.c.l.b16 %v111
  %v375 = vunpack.c.l.b16 %v112
  %v376 = vunpack.c.l.b16 %v113
  %v377 = vunpack.c.l.b16 %v114
  %v378 = vunpack.c.l.b16 %v115
  %v379 = vunpack.c.l.b16 %v116
  %v380 = vunpack.c.l.b16 %v117
  %v381 = vunpack.c.l.b16 %v118
  %v382 = vunpack.c.l.b16 %v119
  %v383 = vunpack.c.l.b16 %v120
  %v384 = vunpack.c.l.b16 %v121
  %v385 = vunpack.c.l.b16 %v122
  %v386 = vunpack.c.l.b16 %v123
  %v387 = vunpack.c.l.b16 %v124
  %v388 = vunpack.c.l.b16 %v125
  %v389 = vunpack.c.l.b16 %v126
  %v390 = vunpack.c.l.b16 %v127
  %v391 = vunpack.c.l.b16 %v128
  %v392 = vunpack.c.l.b16 %v129
  %v393 = vunpack.c.l.b16 %v130
  %v394 = vunpack.c.l.b16 %v131
  %v395 = vunpack.c.l.b16 %v132
  %v396 = vunpack.c.l.b16 %v133
  %v397 = vunpack.c.l.b16 %v134
  %v398 = vunpack.c.l.b16 %v135
  %v399 = vunpack.c.l.b16 %v136
  %v400 = vunpack.c.l.b16 %v137
  %v401 = vunpack.c.l.b16 %v138
  %v402 = vunpack.c.l.b16 %v139
  %v403 = vunpack.c.l.b16 %v140
  %v404 = vunpack.c.l.b16 %v141
  %v405 = vunpack.c.l.b16 %v142
  %v406 = vunpack.c.l.b16 %v143
  %v407 = vunpack.c.l.b16 %v144
  %v408 = vunpack.c.l.b16 %v145
  %v409 = vunpack.c.l.b16 %v146
  %v410 = vunpack.c.l.b16 %v147
  %v411 = vunpack.c.l.b16 %v148
  %v412 = vunpack.c.l.b16 %v149
  %v413 = vunpack.c.l.b16 %v150
  %v414 = vunpack.c.l.b16 %v151
  %v415 = vunpack.c.l.b16 %v152
  %v416 = vunpack.c.l.b16 %v153
  %v417 = vunpack.c.l.b16 %v154
  %v418 = vunpack.c.l.b16 %v155
  %v419 = vunpack.c.l.b16 %v156
  %v420 = vunpack.c.l.b16 %v157
  %v421 = vunpack.c.l.b16 %v158
  %v422 = vunpack.c.l.b16 %v159
  %v423 = vunpack.c.l.b16 %v160
  %v424 = vunpack.c.l.b16 %v161
  %v425 = vunpack.c.l.b16 %v162
  %v426 = vunpack.c.l.b16 %v163
  %v427 = vunpack.c.l.b16 %v164
  %v428 = vpack.c.b16 %v301, %v300
  %v429 = vpack.c.b16 %v303, %v302
  %v430 = vpack.c.b16 %v305, %v304
  %v431 = vpack.c.b16 %v307, %v306
  %v432 = vpack.c.b16 %v309, %v308
  %v433 = vpack.c.b16 %v311, %v310
  %v434 = vpack.c.b16 %v313, %v312
  %v435 = vpack.c.b16 %v315, %v314
  %v436 = vpack.c.b16 %v317, %v316
  %v437 = vpack.c.b16 %v319, %v318
  %v438 = vpack.c.b16 %v321, %v320
  %v439 = vpack.c.b16 %v323, %v322
  %v440 = vpack.c.b16 %v325, %v324
  %v441 = vpack.c.b16 %v327, %v326
  %v442 = vpack.c.b16 %v329, %v328
  %v443 = vpack.c.b16 %v331, %v330
  %v444 = vpack.c.b16 %v333, %v332
  %v445 = vpack.c.b16 %v335, %v334
  %v446 = vpack.c.b16 %v337, %v336
  %v447 = vpack.c.b16 %v339, %v338
  %v448 = vpack.c.b16 %v341, %v340
  %v449 = vpack.c.b16 %v343, %v342
  %v450 = vpack.c.b16 %v345, %v344
  %v451 = vpack.c.b16 %v347, %v346
  %v452 = vpack.c.b16 %v349, %v348
  %v453 = vpack.c.b16 %v351, %v350
  %v454 = vpack.c.b16 %v353, %v352
  %v455 = vpack.c.b16 %v355, %v354
  %v456 = vpack.c.b16 %v357, %v356
  %v457 = vpack.c.b16 %v359, %v358
  %v458 = vpack.c.b16 %v361, %v360
  %v459 = vpack.c.b16 %v363, %v362
  %v460 = vpack.c.b16 %v365, %v364
  %v461 = vpack.c.b16 %v367, %v366
  %v462 = vpack.c.b16 %v369, %v368
  %v463 = vpack.c.b16 %v371, %v370
  %v464 = vpack.c.b16 %v373, %v372
  %v465 = vpack.c.b16 %v375, %v374
  %v466 = vpack.c.b16 %v377, %v376
  %v467 = vpack.c.b16 %v379, %v378
  %v468 = vpack.c.b16 %v381, %v380
  %v469 = vpack.c.b16 %v383, %v382
  %v470 = vpack.c.b16 %v385, %v384
  %v471 = vpack.c.b16 %v387, %v386
  %v472 = vpack.c.b16 %v389, %v388
  %v473 = vpack.c.b16 %v391, %v390
  %v474 = vpack.c.b16 %v393, %v392
  %v475 = vpack.c.b16 %v395, %v394
  %v476 = vpack.c.b16 %v397, %v396
  %v477 = vpack.c.b16 %v399, %v398
  %v478 = vpack.c.b16 %v401, %v400
  %v479 = vpack.c.b16 %v403, %v402
  %v480 = vpack.c.b16 %v405, %v404
  %v481 = vpack.c.b16 %v407, %v406
  %v482 = vpack.c.b16 %v409, %v408
  %v483 = vpack.c.b16 %v411, %v410
  %v484 = vpack.c.b16 %v413, %v412
  %v485 = vpack.c.b16 %v415, %v414
  %v486 = vpack.c.b16 %v417, %v416
  %v487 = vpack.c.b16 %v419, %v418
  %v488 = vpack.c.b16 %v421, %v420
  %v489 = vpack.c.b16 %v423, %v422
  %v490 = vpack.c.b16 %v425, %v424
  %v491 = vpack.c.b16 %v427, %v426
  %556 = vmatprep.subr.bf16.mxu0 0
  %557 = vmatpush1.bf16.msra.mxu0 %v428
  %558 = vmatprep.subr.bf16.mxu0 0
  %559 = vmatpush1.bf16.msra.mxu0 %v429
  %560 = vmatprep.subr.bf16.mxu0 0
  %561 = vmatpush1.bf16.msra.mxu0 %v430
  %562 = vmatprep.subr.bf16.mxu0 0
  %563 = vmatpush1.bf16.msra.mxu0 %v431
  %564 = vmatprep.subr.bf16.mxu0 0
  %565 = vmatpush1.bf16.msra.mxu0 %v432
  %566 = vmatprep.subr.bf16.mxu0 0
  %567 = vmatpush1.bf16.msra.mxu0 %v433
  %568 = vmatprep.subr.bf16.mxu0 0
  %569 = vmatpush1.bf16.msra.mxu0 %v434
  %570 = vmatprep.subr.bf16.mxu0 0
  %571 = vmatpush1.bf16.msra.mxu0 %v435
  %572 = vmatprep.subr.bf16.mxu0 0
  %573 = vmatpush1.bf16.msra.mxu0 %v436
  %574 = vmatprep.subr.bf16.mxu0 0
  %575 = vmatpush1.bf16.msra.mxu0 %v437
  %576 = vmatprep.subr.bf16.mxu0 0
  %577 = vmatpush1.bf16.msra.mxu0 %v438
  %578 = vmatprep.subr.bf16.mxu0 0
  %579 = vmatpush1.bf16.msra.mxu0 %v439
  %580 = vmatprep.subr.bf16.mxu0 0
  %581 = vmatpush1.bf16.msra.mxu0 %v440
  %582 = vmatprep.subr.bf16.mxu0 0
  %583 = vmatpush1.bf16.msra.mxu0 %v441
  %584 = vmatprep.subr.bf16.mxu0 0
  %585 = vmatpush1.bf16.msra.mxu0 %v442
  %586 = vmatprep.subr.bf16.mxu0 0
  %587 = vmatpush1.bf16.msra.mxu0 %v443
  %588 = vmatprep.mubr.bf16.mxu0 %v30
  %589 = vmatmul.mubr.bf16.gmra.mrb[0].mxu0 %v29
  %v590 = vpop.f32.mrb[0].mxu0
  %v591 = vadd.f32 %v170, %v590
  %v592 = vpop.f32.mrb[0].mxu0
  %v593 = vpop.f32.mrb[0].mxu0
  %v594 = vpop.f32.mrb[0].mxu0
  %595 = vdwg.mxu0
  %596 = vmatprep.subr.bf16.mxu0 0
  %597 = vmatpush1.bf16.msra.mxu0 %v444
  %598 = vmatprep.subr.bf16.mxu0 0
  %599 = vmatpush1.bf16.msra.mxu0 %v445
  %600 = vmatprep.subr.bf16.mxu0 0
  %601 = vmatpush1.bf16.msra.mxu0 %v446
  %602 = vmatprep.subr.bf16.mxu0 0
  %603 = vmatpush1.bf16.msra.mxu0 %v447
  %604 = vmatprep.subr.bf16.mxu0 0
  %605 = vmatpush1.bf16.msra.mxu0 %v448
  %606 = vmatprep.subr.bf16.mxu0 0
  %607 = vmatpush1.bf16.msra.mxu0 %v449
  %608 = vmatprep.subr.bf16.mxu0 0
  %609 = vmatpush1.bf16.msra.mxu0 %v450
  %610 = vmatprep.subr.bf16.mxu0 0
  %611 = vmatpush1.bf16.msra.mxu0 %v451
  %612 = vmatprep.subr.bf16.mxu0 0
  %613 = vmatpush1.bf16.msra.mxu0 %v452
  %614 = vmatprep.subr.bf16.mxu0 0
  %615 = vmatpush1.bf16.msra.mxu0 %v453
  %616 = vmatprep.subr.bf16.mxu0 0
  %617 = vmatpush1.bf16.msra.mxu0 %v454
  %618 = vmatprep.subr.bf16.mxu0 0
  %619 = vmatpush1.bf16.msra.mxu0 %v455
  %620 = vmatprep.subr.bf16.mxu0 0
  %621 = vmatpush1.bf16.msra.mxu0 %v456
  %622 = vmatprep.subr.bf16.mxu0 0
  %623 = vmatpush1.bf16.msra.mxu0 %v457
  %624 = vmatprep.subr.bf16.mxu0 0
  %625 = vmatpush1.bf16.msra.mxu0 %v458
  %626 = vmatprep.subr.bf16.mxu0 0
  %627 = vmatpush1.bf16.msra.mxu0 %v459
  %628 = vmatprep.mubr.bf16.mxu0 %v32
  %629 = vmatmul.mubr.bf16.gmra.mrb[0].mxu0 %v31
  %v630 = vpop.f32.mrb[0].mxu0
  %v631 = vadd.f32 %v591, %v630
  %v632 = vpop.f32.mrb[0].mxu0
  %v633 = vpop.f32.mrb[0].mxu0
  %v634 = vpop.f32.mrb[0].mxu0
  %635 = vdwg.mxu0
  %636 = vmatprep.subr.bf16.mxu0 0
  %637 = vmatpush1.bf16.msra.mxu0 %v460
  %638 = vmatprep.subr.bf16.mxu0 0
  %639 = vmatpush1.bf16.msra.mxu0 %v461
  %640 = vmatprep.subr.bf16.mxu0 0
  %641 = vmatpush1.bf16.msra.mxu0 %v462
  %642 = vmatprep.subr.bf16.mxu0 0
  %643 = vmatpush1.bf16.msra.mxu0 %v463
  %644 = vmatprep.subr.bf16.mxu0 0
  %645 = vmatpush1.bf16.msra.mxu0 %v464
  %646 = vmatprep.subr.bf16.mxu0 0
  %647 = vmatpush1.bf16.msra.mxu0 %v465
  %648 = vmatprep.subr.bf16.mxu0 0
  %649 = vmatpush1.bf16.msra.mxu0 %v466
  %650 = vmatprep.subr.bf16.mxu0 0
  %651 = vmatpush1.bf16.msra.mxu0 %v467
  %652 = vmatprep.subr.bf16.mxu0 0
  %653 = vmatpush1.bf16.msra.mxu0 %v468
  %654 = vmatprep.subr.bf16.mxu0 0
  %655 = vmatpush1.bf16.msra.mxu0 %v469
  %656 = vmatprep.subr.bf16.mxu0 0
  %657 = vmatpush1.bf16.msra.mxu0 %v470
  %658 = vmatprep.subr.bf16.mxu0 0
  %659 = vmatpush1.bf16.msra.mxu0 %v471
  %660 = vmatprep.subr.bf16.mxu0 0
  %661 = vmatpush1.bf16.msra.mxu0 %v472
  %662 = vmatprep.subr.bf16.mxu0 0
  %663 = vmatpush1.bf16.msra.mxu0 %v473
  %664 = vmatprep.subr.bf16.mxu0 0
  %665 = vmatpush1.bf16.msra.mxu0 %v474
  %666 = vmatprep.subr.bf16.mxu0 0
  %667 = vmatpush1.bf16.msra.mxu0 %v475
  %668 = vmatprep.mubr.bf16.mxu0 %v34
  %669 = vmatmul.mubr.bf16.gmra.mrb[0].mxu0 %v33
  %v670 = vpop.f32.mrb[0].mxu0
  %v671 = vadd.f32 %v631, %v670
  %v672 = vpop.f32.mrb[0].mxu0
  %v673 = vpop.f32.mrb[0].mxu0
  %v674 = vpop.f32.mrb[0].mxu0
  %675 = vdwg.mxu0
  %676 = vmatprep.subr.bf16.mxu0 0
  %677 = vmatpush1.bf16.msra.mxu0 %v476
  %678 = vmatprep.subr.bf16.mxu0 0
  %679 = vmatpush1.bf16.msra.mxu0 %v477
  %680 = vmatprep.subr.bf16.mxu0 0
  %681 = vmatpush1.bf16.msra.mxu0 %v478
  %682 = vmatprep.subr.bf16.mxu0 0
  %683 = vmatpush1.bf16.msra.mxu0 %v479
  %684 = vmatprep.subr.bf16.mxu0 0
  %685 = vmatpush1.bf16.msra.mxu0 %v480
  %686 = vmatprep.subr.bf16.mxu0 0
  %687 = vmatpush1.bf16.msra.mxu0 %v481
  %688 = vmatprep.subr.bf16.mxu0 0
  %689 = vmatpush1.bf16.msra.mxu0 %v482
  %690 = vmatprep.subr.bf16.mxu0 0
  %691 = vmatpush1.bf16.msra.mxu0 %v483
  %692 = vmatprep.subr.bf16.mxu0 0
  %693 = vmatpush1.bf16.msra.mxu0 %v484
  %694 = vmatprep.subr.bf16.mxu0 0
  %695 = vmatpush1.bf16.msra.mxu0 %v485
  %696 = vmatprep.subr.bf16.mxu0 0
  %697 = vmatpush1.bf16.msra.mxu0 %v486
  %698 = vmatprep.subr.bf16.mxu0 0
  %699 = vmatpush1.bf16.msra.mxu0 %v487
  %700 = vmatprep.subr.bf16.mxu0 0
  %701 = vmatpush1.bf16.msra.mxu0 %v488
  %702 = vmatprep.subr.bf16.mxu0 0
  %703 = vmatpush1.bf16.msra.mxu0 %v489
  %704 = vmatprep.subr.bf16.mxu0 0
  %705 = vmatpush1.bf16.msra.mxu0 %v490
  %706 = vmatprep.subr.bf16.mxu0 0
  %707 = vmatpush1.bf16.msra.mxu0 %v491
  %708 = vmatprep.mubr.bf16.mxu0 %v36
  %709 = vmatmul.mubr.bf16.gmra.mrb[0].mxu0 %v35
  %v710 = vpop.f32.mrb[0].mxu0
  %v711 = vadd.f32 %v671, %v710
  %v712 = vpop.f32.mrb[0].mxu0
  %v713 = vpop.f32.mrb[0].mxu0
  %v714 = vpop.f32.mrb[0].mxu0
  %715 = vdwg.mxu0
  %v716 = vmax.f32 %v711, 0.0
  %v717 = vld [vmem:[%s3] sm:$0xff]
  %v718 = vld [vmem:[%s3 + $0x8] sm:$0xff]
  %v719 = vld [vmem:[%s3 + $0x10] sm:$0xff]
  %v720 = vld [vmem:[%s3 + $0x18] sm:$0xff]
  %v721 = vld [vmem:[%s3 + $0x20] sm:$0xff]
  %v722 = vld [vmem:[%s3 + $0x28] sm:$0xff]
  %v723 = vld [vmem:[%s3 + $0x30] sm:$0xff]
  %v724 = vld [vmem:[%s3 + $0x38] sm:$0xff]
  %v725 = vld [vmem:[%s4] sm:$0x1]
  %v727 = vlaneseq
  %v728 = vshrl.u32 %v727, 7
  %v729 = vsub.s32 0, %v728
  %v730 = vrot.slane %v725, %v729
  %vm732 = vcmask 523264
  %v734 = vsel %vm732, %v716, 0
  %736 = vmatprep.subr.mxu0 0.0
  %737 = vmatpush1.msra.mxu0 %v717
  %738 = vmatprep.subr.mxu0 0.0
  %739 = vmatpush1.msra.mxu0 %v718
  %740 = vmatprep.subr.mxu0 0.0
  %741 = vmatpush1.msra.mxu0 %v719
  %742 = vmatprep.subr.mxu0 0.0
  %743 = vmatpush1.msra.mxu0 %v720
  %744 = vmatprep.subr.mxu0 0.0
  %745 = vmatpush1.msra.mxu0 %v721
  %746 = vmatprep.subr.mxu0 0.0
  %747 = vmatpush1.msra.mxu0 %v722
  %748 = vmatprep.subr.mxu0 0.0
  %749 = vmatpush1.msra.mxu0 %v723
  %750 = vmatprep.subr.mxu0 0.0
  %751 = vmatpush1.msra.mxu0 %v724
  %752 = vmatprep.subr.mxu0 0.0
  %753 = vmatpush1.msra.mxu0 0.0
  %754 = vmatprep.subr.mxu0 0.0
  %755 = vmatpush1.msra.mxu0 0.0
  %756 = vmatprep.subr.mxu0 0.0
  %757 = vmatpush1.msra.mxu0 0.0
  %758 = vmatprep.subr.mxu0 0.0
  %759 = vmatpush1.msra.mxu0 0.0
  %760 = vmatprep.subr.mxu0 0.0
  %761 = vmatpush1.msra.mxu0 0.0
  %762 = vmatprep.subr.mxu0 0.0
  %763 = vmatpush1.msra.mxu0 0.0
  %764 = vmatprep.subr.mxu0 0.0
  %765 = vmatpush1.msra.mxu0 0.0
  %766 = vmatprep.subr.mxu0 0.0
  %767 = vmatpush1.msra.mxu0 0.0
  %768 = vmatprep.subr.mxu0 0.0
  %769 = vmatpush1.msra.mxu0 0.0
  %770 = vmatprep.subr.mxu0 0.0
  %771 = vmatpush1.msra.mxu0 0.0
  %772 = vmatprep.subr.mxu0 0.0
  %773 = vmatpush1.msra.mxu0 0.0
  %774 = vmatprep.subr.mxu0 0.0
  %775 = vmatpush1.msra.mxu0 0.0
  %776 = vmatprep.subr.mxu0 0.0
  %777 = vmatpush1.msra.mxu0 0.0
  %778 = vmatprep.subr.mxu0 0.0
  %779 = vmatpush1.msra.mxu0 0.0
  %780 = vmatprep.subr.mxu0 0.0
  %781 = vmatpush1.msra.mxu0 0.0
  %782 = vmatprep.subr.mxu0 0.0
  %783 = vmatpush1.msra.mxu0 0.0
  %784 = vmatprep.subr.mxu0 0.0
  %785 = vmatpush1.msra.mxu0 0.0
  %786 = vmatprep.subr.mxu0 0.0
  %787 = vmatpush1.msra.mxu0 0.0
  %788 = vmatprep.subr.mxu0 0.0
  %789 = vmatpush1.msra.mxu0 0.0
  %790 = vmatprep.subr.mxu0 0.0
  %791 = vmatpush1.msra.mxu0 0.0
  %792 = vmatprep.subr.mxu0 0.0
  %793 = vmatpush1.msra.mxu0 0.0
  %794 = vmatprep.subr.mxu0 0.0
  %795 = vmatpush1.msra.mxu0 0.0
  %796 = vmatprep.subr.mxu0 0.0
  %797 = vmatpush1.msra.mxu0 0.0
  %798 = vmatprep.subr.mxu0 0.0
  %799 = vmatpush1.msra.mxu0 0.0
  %800 = vmatprep.mubr.f32.mxu0 0.0
  %801 = vmatmul.mubr.f32.gmra.mrb[0].mxu0 %v734
  %v802 = vpop.f32.mrb[0].mxu0
  %v803 = vadd.f32 %v730, %v802
  %v804 = vpop.f32.mrb[0].mxu0
  %805 = vdwg.mxu0
  %v806 = vlaneseq
  %v807 = vand.u32 %v806, 127
  %vm808 = vcmp.lt.s32.totalorder %v807, 15
  %v809 = vsel %vm808, %v803, -1e+30
  %810 = vmax.xlane.f32.xlu0 %v809
  %v811 = vpop.xlane.xlu0 %810
  %v812 = vsub.f32 %v803, %v811
  %v813 = vmul.f32 %v812, 1.442695
  %v814 = vpow.pop %v813
  %v815 = vsel %vm808, %v814, 0.0
  %816 = vadd.xlane.f32.xlu0 %v815
  %v817 = vpop.xlane.xlu0 %816
  %v818 = vlog2.pop %v817
  %v819 = vmul.f32 %v818, 0.6931472
  %v820 = vadd.f32 %v811, %v819
  %vm821 = vcmp.ge.s32.totalorder %v807, 16
  %vm822 = vcmp.lt.s32.totalorder %v807, 31
  %vm823 = vmand %vm821, %vm822
  %v824 = vsub.f32 %v803, %v820
  %v825 = vsel %vm823, %v824, %v803
  %826 = vst [vmem:[%s5] sm:$0xff] %v825
  // Predicated region
  $region22: #{policy_forward.1} parent=0 // pred_check
    _
  $region23: #{policy_forward.1} parent=0 // pred_check_branch
    %828 = sbr.rel (0) target = $region25
  $region24: #{policy_forward.1} parent=0 // pred_region
    _
  $region25: #{policy_forward.1} parent=0 // pred_fallthru
    _
  // Predicated region
  $region26: #{policy_forward.1} parent=0 // pred_check
    _
  $region27: #{policy_forward.1} parent=0 // pred_check_branch
    %830 = sbr.rel (0) target = $region29
  $region28: #{policy_forward.1} parent=0 // pred_region
    _
  $region29: #{policy_forward.1} parent=0 // pred_fallthru
    _

</llo_original>
